<compile_context>
chip_gen: v7x
topology: tpu7x:2x2x1
jax: 0.10.0
libtpu: 0.0.40
codegen_flags: <defaults>
</compile_context>

<pallas_src>
import functools

import jax
import jax.numpy as jnp
from jax.experimental import pallas as pl
from jax.experimental.pallas import tpu as pltpu

LN_EPS = 1e-5


def _rup(x, m):
    return ((x + m - 1) // m) * m


# --------------------------------------------------------------------------- #
# Kernel
# --------------------------------------------------------------------------- #
def _icm_kernel(obs_ref, act_ref, nobs_ref, w_ref, out_ref, *,
                bm, obs_dim, act_dim, rep_dim, hidden_dim, r_w1, r_w2, r_vec):
    O, A, R, H = obs_dim, act_dim, rep_dim, hidden_dim
    K1 = 2 * R + A

    # ---- packed weights: static slices of the single weight blob (VMEM) -----
    Wt = w_ref[0:O, 0:R]                          # trunk Linear          (O, R)
    W1 = w_ref[r_w1:r_w1 + K1, 0:2 * H]           # fused first layers    (2R+A, 2H)
    W2 = w_ref[r_w2:r_w2 + 2 * H, 0:R + A]        # block-diag 2nd layers (2H, R+A)
    bt = w_ref[r_vec + 0:r_vec + 1, 0:R]
    ln_g = w_ref[r_vec + 1:r_vec + 2, 0:R]
    ln_b = w_ref[r_vec + 2:r_vec + 3, 0:R]
    b1 = w_ref[r_vec + 3:r_vec + 4, 0:2 * H]      # [bf1 | bb1]
    b2 = w_ref[r_vec + 4:r_vec + 5, 0:R + A]      # [bf2 | bb2]

    obs = obs_ref[...]
    act = act_ref[...]
    nobs = nobs_ref[...]

    # ---- trunk: single pass over [obs; next_obs] stacked on the batch axis --
    x = jnp.concatenate([obs, nobs], axis=0)                       # (2*bm, O)
    h = jnp.dot(x, Wt, preferred_element_type=jnp.float32) + bt    # (2*bm, R)
    mean = jnp.mean(h, axis=-1, keepdims=True)
    var = jnp.mean(jnp.square(h - mean), axis=-1, keepdims=True)
    reps = jnp.tanh((h - mean) * jax.lax.rsqrt(var + LN_EPS) * ln_g + ln_b)
    obs_rep = reps[:bm]                                            # (bm, R)
    nobs_rep = reps[bm:]                                           # (bm, R)

    # ---- fused forward_net / backward_net ------------------------------------
    z1 = jnp.concatenate([obs_rep, act, nobs_rep], axis=-1)        # (bm, 2R+A)
    h1 = jnp.maximum(
        jnp.dot(z1, W1, preferred_element_type=jnp.float32) + b1, 0.0)  # (bm, 2H)
    z2 = jnp.dot(h1, W2, preferred_element_type=jnp.float32) + b2  # (bm, R+A)

    # columns [0, R) -> next_obs_hat (no tanh), columns [R, R+A) -> tanh(action_hat)
    lane = jax.lax.broadcasted_iota(jnp.int32, (1, R + A), 1)
    pred = jnp.where(lane >= R, jnp.tanh(z2), z2)                  # (bm, R+A)
    target = jnp.concatenate([nobs_rep, act], axis=-1)             # (bm, R+A)
    d2 = jnp.square(target - pred)                                 # (bm, R+A)

    # lane-dense reduction on the MXU: selector (2, R+A) . d2^T -> (2, bm)
    sel = jnp.concatenate([(lane < R).astype(jnp.float32),
                           (lane >= R).astype(jnp.float32)], axis=0)
    nt = (((1,), (1,)), ((), ()))                                  # contract last dims
    ssq = jax.lax.dot_general(sel, d2, nt, preferred_element_type=jnp.float32)
    out_ref[...] = jnp.sqrt(ssq)                                   # row 0: ferr, row 1: berr


# --------------------------------------------------------------------------- #
# Host-side weight packing (one padded f32 blob)
# --------------------------------------------------------------------------- #
def pack_params(params):
    """Pack the 14 ICM parameter arrays into a single padded f32 VMEM blob."""
    O, R = params["wt"].shape
    A = params["wf1_act"].shape[0]
    H = params["wf1_obs"].shape[1]
    K1 = 2 * R + A

    r_w1 = _rup(O, 8)
    r_w2 = r_w1 + _rup(K1, 8)
    r_vec = r_w2 + _rup(2 * H, 8)
    n_rows = r_vec + 8
    n_cols = _rup(max(R, 2 * H, R + A), 128)

    f32 = jnp.float32
    W1 = jnp.zeros((K1, 2 * H), f32)
    W1 = W1.at[:R, :H].set(params["wf1_obs"].astype(f32))
    W1 = W1.at[:R, H:].set(params["wb1_obs"].astype(f32))
    W1 = W1.at[R:R + A, :H].set(params["wf1_act"].astype(f32))
    W1 = W1.at[R + A:, H:].set(params["wb1_nobs"].astype(f32))

    W2 = jnp.zeros((2 * H, R + A), f32)
    W2 = W2.at[:H, :R].set(params["wf2"].astype(f32))
    W2 = W2.at[H:, R:].set(params["wb2"].astype(f32))

    w = jnp.zeros((n_rows, n_cols), f32)
    w = w.at[0:O, 0:R].set(params["wt"].astype(f32))
    w = w.at[r_w1:r_w1 + K1, 0:2 * H].set(W1)
    w = w.at[r_w2:r_w2 + 2 * H, 0:R + A].set(W2)
    w = w.at[r_vec + 0, 0:R].set(params["bt"].reshape(-1).astype(f32))
    w = w.at[r_vec + 1, 0:R].set(params["ln_g"].reshape(-1).astype(f32))
    w = w.at[r_vec + 2, 0:R].set(params["ln_b"].reshape(-1).astype(f32))
    w = w.at[r_vec + 3, 0:H].set(params["bf1"].reshape(-1).astype(f32))
    w = w.at[r_vec + 3, H:2 * H].set(params["bb1"].reshape(-1).astype(f32))
    w = w.at[r_vec + 4, 0:R].set(params["bf2"].reshape(-1).astype(f32))
    w = w.at[r_vec + 4, R:R + A].set(params["bb2"].reshape(-1).astype(f32))

    dims = dict(obs_dim=O, act_dim=A, rep_dim=R, hidden_dim=H,
                r_w1=r_w1, r_w2=r_w2, r_vec=r_vec)
    return w, dims


# --------------------------------------------------------------------------- #
# Wrapper
# --------------------------------------------------------------------------- #
def icm_forward(obs, action, next_obs, params, *, bm=None):
    B, obs_dim = obs.shape
    _, act_dim = action.shape

    wblob, dims = pack_params(params)
    assert dims["obs_dim"] == obs_dim and dims["act_dim"] == act_dim

    # Batch tile: use the full batch when it fits in one big tile; otherwise a
    # large multiple of 128 so the (2, bm) lane-dense output block stays aligned
    # and the MXU M dimension is full.  (>=2 grid steps also lets v7x shard the
    # "parallel" batch axis across both TensorCores.)
    if bm is None:
        bm = 1024
    bm = min(bm, B)
    if bm < B:
        bm = max(128, (bm // 128) * 128)

    grid = (pl.cdiv(B, bm),)
    kernel = functools.partial(_icm_kernel, bm=bm, **dims)

    out = pl.pallas_call(
        kernel,
        grid=grid,
        in_specs=[
            pl.BlockSpec((bm, obs_dim), lambda i: (i, 0)),   # obs
            pl.BlockSpec((bm, act_dim), lambda i: (i, 0)),   # action
            pl.BlockSpec((bm, obs_dim), lambda i: (i, 0)),   # next_obs
            pl.BlockSpec(wblob.shape, lambda i: (0, 0)),     # packed weights (resident)
        ],
        # lane-dense output: batch on the 128-lane axis, row 0 = ferr, row 1 = berr
        out_specs=pl.BlockSpec((2, bm), lambda i: (0, i)),
        out_shape=jax.ShapeDtypeStruct((2, B), jnp.float32),
        compiler_params=pltpu.CompilerParams(
            dimension_semantics=("parallel",)),
    )(obs, action, next_obs, wblob)

    ferr = out[0][:, None]
    berr = out[1][:, None]
    return ferr, berr


# --------------------------------------------------------------------------- #
# Pure-JAX reference (mirrors the PyTorch forward pass)
# --------------------------------------------------------------------------- #
def icm_reference(obs, action, next_obs, params):
    def trunk(x):
        h = x @ params["wt"] + params["bt"]
        mean = jnp.mean(h, axis=-1, keepdims=True)
        var = jnp.mean((h - mean) ** 2, axis=-1, keepdims=True)
        hn = (h - mean) / jnp.sqrt(var + LN_EPS)
        return jnp.tanh(hn * params["ln_g"] + params["ln_b"])

    obs_rep = trunk(obs)
    nobs_rep = trunk(next_obs)
    h_f = jnp.maximum(
        jnp.concatenate([obs_rep, action], -1)
        @ jnp.concatenate([params["wf1_obs"], params["wf1_act"]], 0)
        + params["bf1"], 0.0)
    nobs_hat = h_f @ params["wf2"] + params["bf2"]
    h_b = jnp.maximum(
        jnp.concatenate([obs_rep, nobs_rep], -1)
        @ jnp.concatenate([params["wb1_obs"], params["wb1_nobs"]], 0)
        + params["bb1"], 0.0)
    act_hat = jnp.tanh(h_b @ params["wb2"] + params["bb2"])
    ferr = jnp.linalg.norm(nobs_rep - nobs_hat, axis=-1, keepdims=True)
    berr = jnp.linalg.norm(action - act_hat, axis=-1, keepdims=True)
    return ferr, berr


def init_params(key, obs_dim, action_dim, hidden_dim, rep_dim):
    """Deterministic synthetic init with the right shapes (stand-in for
    utils.weight_init in the PyTorch module)."""
    keys = jax.random.split(key, 10)

    def lin(k, fan_in, fan_out):
        scale = 1.0 / jnp.sqrt(fan_in)
        w = jax.random.uniform(k, (fan_in, fan_out), jnp.float32, -scale, scale)
        b = jnp.zeros((1, fan_out), jnp.float32)
        return w, b

    wt, bt = lin(keys[0], obs_dim, rep_dim)
    wf1, bf1 = lin(keys[1], rep_dim + action_dim, hidden_dim)
    wf2, bf2 = lin(keys[2], hidden_dim, rep_dim)
    wb1, bb1 = lin(keys[3], 2 * rep_dim, hidden_dim)
    wb2, bb2 = lin(keys[4], hidden_dim, action_dim)

    return {
        "wt": wt, "bt": bt,
        "ln_g": jnp.ones((1, rep_dim), jnp.float32),
        "ln_b": jnp.zeros((1, rep_dim), jnp.float32),
        "wf1_obs": wf1[:rep_dim], "wf1_act": wf1[rep_dim:], "bf1": bf1,
        "wf2": wf2, "bf2": bf2,
        "wb1_obs": wb1[:rep_dim], "wb1_nobs": wb1[rep_dim:], "bb1": bb1,
        "wb2": wb2, "bb2": bb2,
    }


if __name__ == "__main__":
    B = 8
    obs_dim = 24
    action_dim = 6
    icm_rep_hidden_dim = 32
    icm_rep_dim = 16

    key = jax.random.PRNGKey(0)
    k_obs, k_act, k_nobs, k_par = jax.random.split(key, 4)

    obs = jax.random.normal(k_obs, (B, obs_dim), jnp.float32)
    action = jnp.tanh(jax.random.normal(k_act, (B, action_dim), jnp.float32))
    next_obs = jax.random.normal(k_nobs, (B, obs_dim), jnp.float32)

    params = init_params(k_par, obs_dim, action_dim,
                         icm_rep_hidden_dim, icm_rep_dim)

    ferr, berr = icm_forward(obs, action, next_obs, params)
    jax.block_until_ready((ferr, berr))

    ferr_ref, berr_ref = icm_reference(obs, action, next_obs, params)
    assert ferr.shape == (B, 1) and berr.shape == (B, 1)
    assert jnp.allclose(ferr, ferr_ref, atol=1e-4, rtol=1e-4)
    assert jnp.allclose(berr, berr_ref, atol=1e-4, rtol=1e-4)

    print("KERNEL_OK")
</pallas_src>

<mosaic_0001>
module attributes {stable_mosaic.version = 11 : i64} {
  func.func @_icm_kernel(%arg0: i32, %arg1: memref<8x24xf32, #tpu.memory_space<vmem>>, %arg2: memref<8x6xf32, #tpu.memory_space<vmem>>, %arg3: memref<8x24xf32, #tpu.memory_space<vmem>>, %arg4: memref<136x128xf32, #tpu.memory_space<vmem>>, %arg5: memref<2x8xf32, #tpu.memory_space<vmem>>) attributes {dimension_semantics = [#tpu.dimension_semantics<parallel>], iteration_bounds = array<i64: 1>, scalar_prefetch = 0 : i64, scratch_operands = 0 : i64, tpu.core_type = #tpu.core_type<tc>, window_params = [{transform_indices = @transform_0, window_bounds = array<i64: 8, 24>}, {transform_indices = @transform_1, window_bounds = array<i64: 8, 6>}, {transform_indices = @transform_2, window_bounds = array<i64: 8, 24>}, {pipeline_mode = #tpu.pipeline_mode<synchronous>, transform_indices = @transform_3, window_bounds = array<i64: 136, 128>}, {transform_indices = @transform_4, window_bounds = array<i64: 2, 8>}]} {
    %c0 = arith.constant 0 : index
    %c0_0 = arith.constant 0 : index
    %0 = vector.load %arg4[%c0, %c0_0] : memref<136x128xf32, #tpu.memory_space<vmem>>, vector<24x16xf32>
    %c24 = arith.constant 24 : index
    %c0_1 = arith.constant 0 : index
    %1 = vector.load %arg4[%c24, %c0_1] : memref<136x128xf32, #tpu.memory_space<vmem>>, vector<38x64xf32>
    %c64 = arith.constant 64 : index
    %c0_2 = arith.constant 0 : index
    %2 = vector.load %arg4[%c64, %c0_2] : memref<136x128xf32, #tpu.memory_space<vmem>>, vector<64x22xf32>
    %c128 = arith.constant 128 : index
    %c0_3 = arith.constant 0 : index
    %3 = vector.load %arg4[%c128, %c0_3] : memref<136x128xf32, #tpu.memory_space<vmem>>, vector<1x16xf32>
    %c129 = arith.constant 129 : index
    %c0_4 = arith.constant 0 : index
    %4 = vector.load %arg4[%c129, %c0_4] : memref<136x128xf32, #tpu.memory_space<vmem>>, vector<1x16xf32>
    %c130 = arith.constant 130 : index
    %c0_5 = arith.constant 0 : index
    %5 = vector.load %arg4[%c130, %c0_5] : memref<136x128xf32, #tpu.memory_space<vmem>>, vector<1x16xf32>
    %c131 = arith.constant 131 : index
    %c0_6 = arith.constant 0 : index
    %6 = vector.load %arg4[%c131, %c0_6] : memref<136x128xf32, #tpu.memory_space<vmem>>, vector<1x64xf32>
    %c132 = arith.constant 132 : index
    %c0_7 = arith.constant 0 : index
    %7 = vector.load %arg4[%c132, %c0_7] : memref<136x128xf32, #tpu.memory_space<vmem>>, vector<1x22xf32>
    %c0_8 = arith.constant 0 : index
    %c0_9 = arith.constant 0 : index
    %8 = vector.load %arg1[%c0_8, %c0_9] : memref<8x24xf32, #tpu.memory_space<vmem>>, vector<8x24xf32>
    %c0_10 = arith.constant 0 : index
    %c0_11 = arith.constant 0 : index
    %9 = vector.load %arg2[%c0_10, %c0_11] : memref<8x6xf32, #tpu.memory_space<vmem>>, vector<8x6xf32>
    %c0_12 = arith.constant 0 : index
    %c0_13 = arith.constant 0 : index
    %10 = vector.load %arg3[%c0_12, %c0_13] : memref<8x24xf32, #tpu.memory_space<vmem>>, vector<8x24xf32>
    %11 = tpu.concatenate %8, %10 in 0 : vector<8x24xf32>, vector<8x24xf32> -> vector<16x24xf32>
    %cst = arith.constant dense<0.000000e+00> : vector<16x16xf32>
    %12 = tpu.matmul %11, %0, %cst {dimension_numbers = #tpu.dot_dimension_numbers<[1], [0], [0], [1], [0, 0, 1, 1], [], []>} : vector<16x24xf32>, vector<24x16xf32>, vector<16x16xf32> -> vector<16x16xf32>
    %13 = vector.broadcast %3 : vector<1x16xf32> to vector<16x16xf32>
    %14 = arith.addf %12, %13 : vector<16x16xf32>
    %cst_14 = arith.constant dense<0.000000e+00> : vector<16xf32>
    %15 = vector.multi_reduction <add>, %14, %cst_14 [1] : vector<16x16xf32> to vector<16xf32>
    %16 = vector.shape_cast %15 : vector<16xf32> to vector<16x1xf32>
    %cst_15 = arith.constant 1.600000e+01 : f32
    %17 = vector.broadcast %cst_15 : f32 to vector<16x1xf32>
    %18 = arith.divf %16, %17 : vector<16x1xf32>
    %19 = vector.broadcast %18 : vector<16x1xf32> to vector<16x16xf32>
    %20 = arith.subf %14, %19 : vector<16x16xf32>
    %21 = arith.mulf %20, %20 : vector<16x16xf32>
    %cst_16 = arith.constant dense<0.000000e+00> : vector<16xf32>
    %22 = vector.multi_reduction <add>, %21, %cst_16 [1] : vector<16x16xf32> to vector<16xf32>
    %23 = vector.shape_cast %22 : vector<16xf32> to vector<16x1xf32>
    %cst_17 = arith.constant 1.600000e+01 : f32
    %24 = vector.broadcast %cst_17 : f32 to vector<16x1xf32>
    %25 = arith.divf %23, %24 : vector<16x1xf32>
    %26 = vector.broadcast %18 : vector<16x1xf32> to vector<16x16xf32>
    %27 = arith.subf %14, %26 : vector<16x16xf32>
    %cst_18 = arith.constant 9.99999974E-6 : f32
    %28 = vector.broadcast %cst_18 : f32 to vector<16x1xf32>
    %29 = arith.addf %25, %28 : vector<16x1xf32>
    %30 = math.rsqrt %29 : vector<16x1xf32>
    %31 = vector.broadcast %30 : vector<16x1xf32> to vector<16x16xf32>
    %32 = arith.mulf %27, %31 : vector<16x16xf32>
    %33 = vector.broadcast %4 : vector<1x16xf32> to vector<16x16xf32>
    %34 = arith.mulf %32, %33 : vector<16x16xf32>
    %35 = vector.broadcast %5 : vector<1x16xf32> to vector<16x16xf32>
    %36 = arith.addf %34, %35 : vector<16x16xf32>
    %37 = math.tanh %36 : vector<16x16xf32>
    %38 = vector.extract_strided_slice %37 {offsets = [0, 0], sizes = [8, 16], strides = [1, 1]} : vector<16x16xf32> to vector<8x16xf32>
    %39 = vector.extract_strided_slice %37 {offsets = [8, 0], sizes = [8, 16], strides = [1, 1]} : vector<16x16xf32> to vector<8x16xf32>
    %40 = tpu.concatenate %38, %9, %39 in 1 : vector<8x16xf32>, vector<8x6xf32>, vector<8x16xf32> -> vector<8x38xf32>
    %cst_19 = arith.constant dense<0.000000e+00> : vector<8x64xf32>
    %41 = tpu.matmul %40, %1, %cst_19 {dimension_numbers = #tpu.dot_dimension_numbers<[1], [0], [0], [1], [0, 0, 1, 1], [], []>} : vector<8x38xf32>, vector<38x64xf32>, vector<8x64xf32> -> vector<8x64xf32>
    %42 = vector.broadcast %6 : vector<1x64xf32> to vector<8x64xf32>
    %43 = arith.addf %41, %42 : vector<8x64xf32>
    %cst_20 = arith.constant 0.000000e+00 : f32
    %44 = vector.broadcast %cst_20 : f32 to vector<8x64xf32>
    %45 = arith.maximumf %43, %44 : vector<8x64xf32>
    %cst_21 = arith.constant dense<0.000000e+00> : vector<8x22xf32>
    %46 = tpu.matmul %45, %2, %cst_21 {dimension_numbers = #tpu.dot_dimension_numbers<[1], [0], [0], [1], [0, 0, 1, 1], [], []>} : vector<8x64xf32>, vector<64x22xf32>, vector<8x22xf32> -> vector<8x22xf32>
    %47 = vector.broadcast %7 : vector<1x22xf32> to vector<8x22xf32>
    %48 = arith.addf %46, %47 : vector<8x22xf32>
    %49 = tpu.iota {dimensions = array<i32: 1>} : vector<1x22xi32>
    %c16_i32 = arith.constant 16 : i32
    %50 = vector.broadcast %c16_i32 : i32 to vector<1x22xi32>
    %51 = arith.cmpi sge, %49, %50 : vector<1x22xi32>
    %52 = math.tanh %48 : vector<8x22xf32>
    %53 = vector.shape_cast %51 : vector<1x22xi1> to vector<1x22xi1>
    %54 = vector.broadcast %53 : vector<1x22xi1> to vector<8x22xi1>
    %55 = arith.select %54, %52, %48 : vector<8x22xi1>, vector<8x22xf32>
    %56 = tpu.concatenate %39, %9 in 1 : vector<8x16xf32>, vector<8x6xf32> -> vector<8x22xf32>
    %57 = arith.subf %56, %55 : vector<8x22xf32>
    %58 = arith.mulf %57, %57 : vector<8x22xf32>
    %c16_i32_22 = arith.constant 16 : i32
    %59 = vector.broadcast %c16_i32_22 : i32 to vector<1x22xi32>
    %60 = arith.cmpi slt, %49, %59 : vector<1x22xi32>
    %61 = arith.extui %60 : vector<1x22xi1> to vector<1x22xi32>
    %62 = arith.sitofp %61 : vector<1x22xi32> to vector<1x22xf32>
    %c16_i32_23 = arith.constant 16 : i32
    %63 = vector.broadcast %c16_i32_23 : i32 to vector<1x22xi32>
    %64 = arith.cmpi sge, %49, %63 : vector<1x22xi32>
    %65 = arith.extui %64 : vector<1x22xi1> to vector<1x22xi32>
    %66 = arith.sitofp %65 : vector<1x22xi32> to vector<1x22xf32>
    %67 = tpu.concatenate %62, %66 in 0 : vector<1x22xf32>, vector<1x22xf32> -> vector<2x22xf32>
    %cst_24 = arith.constant dense<0.000000e+00> : vector<2x8xf32>
    %68 = tpu.matmul %67, %58, %cst_24 {dimension_numbers = #tpu.dot_dimension_numbers<[1], [1], [0], [0], [0, 0, 1, 0], [], []>} : vector<2x22xf32>, vector<8x22xf32>, vector<2x8xf32> -> vector<2x8xf32>
    %69 = math.sqrt %68 : vector<2x8xf32>
    %c0_25 = arith.constant 0 : index
    %c0_26 = arith.constant 0 : index
    %70 = vector.load %arg5[%c0_25, %c0_26] : memref<2x8xf32, #tpu.memory_space<vmem>>, vector<2x8xf32>
    tpu.vector_store %arg5[%c0_25, %c0_26], %69 {strides = array<i32>} : memref<2x8xf32, #tpu.memory_space<vmem>>, vector<2x8xf32>,
    return
  }
  func.func @transform_0(%arg0: i32) -> (i32, i32) {
    %c0_i32 = arith.constant 0 : i32
    %c0_i32_0 = arith.constant 0 : i32
    return %arg0, %c0_i32 : i32, i32
  }
  func.func @transform_1(%arg0: i32) -> (i32, i32) {
    %c0_i32 = arith.constant 0 : i32
    %c0_i32_0 = arith.constant 0 : i32
    return %arg0, %c0_i32 : i32, i32
  }
  func.func @transform_2(%arg0: i32) -> (i32, i32) {
    %c0_i32 = arith.constant 0 : i32
    %c0_i32_0 = arith.constant 0 : i32
    return %arg0, %c0_i32 : i32, i32
  }
  func.func @transform_3(%arg0: i32) -> (i32, i32) {
    %c0_i32 = arith.constant 0 : i32
    %c0_i32_0 = arith.constant 0 : i32
    %c0_i32_1 = arith.constant 0 : i32
    return %c0_i32, %c0_i32_0 : i32, i32
  }
  func.func @transform_4(%arg0: i32) -> (i32, i32) {
    %c0_i32 = arith.constant 0 : i32
    %c0_i32_0 = arith.constant 0 : i32
    return %c0_i32, %arg0 : i32, i32
  }
}

</mosaic_0001>

<llo_original>
// kernel: tpu_custom_call.1
$region0: #{tpu_custom_call.1}
  #allocation0 [shape = 'u32[]', space=smem, size = 0x4, offset = 0x4, fixed_abs, tag = 'smem constant byte address 0x4 - core index']
  #allocation1 [shape = 'u32[144,128]{1,0:T(1,128)}', space=vmem, size = 0x12000, scoped, tag = 'internal scratch']
  %s0 = inlined_call_operand.hbm [shape: f32[8,24], index: 0, kind: input, shape index: {}]
  %s1 = inlined_call_operand.hbm [shape: f32[8,6], index: 1, kind: input, shape index: {}]
  %s2 = inlined_call_operand.hbm [shape: f32[8,24], index: 2, kind: input, shape index: {}]
  %s3 = inlined_call_operand.hbm [shape: f32[136,128], index: 3, kind: input, shape index: {}]
  %s4 = inlined_call_operand.hbm [shape: f32[2,8], index: 4, kind: output, shape index: {}]
  %s5 = sld [smem:[#allocation0]]
  $region42: #{tpu_custom_call.1} parent=0
    _
  %s7 = ssub.s32 1, %s5
  %s8 = scalar_select 0, %s7, %s5
  $region1: #{tpu_custom_call.1} parent=0
    #allocation2 [shape = 'u8[4096]{0}', space=vmem, size = 0x1000, scoped, tag = 'input window, operand 0, single buffered']
    #allocation3 [shape = 's32[1]{0}', space=sflag, size = 0x4, scoped, tag = 'scoped memory for tpu_custom_call.1']
    #allocation4 [shape = 's32[1]{0}', space=sflag, size = 0x4, scoped, tag = 'scoped memory for tpu_custom_call.1']
    #allocation5 [shape = 'u8[4096]{0}', space=vmem, size = 0x1000, scoped, tag = 'input window, operand 1, single buffered']
    #allocation6 [shape = 's32[1]{0}', space=sflag, size = 0x4, scoped, tag = 'scoped memory for tpu_custom_call.1']
    #allocation7 [shape = 'u8[4096]{0}', space=vmem, size = 0x1000, scoped, tag = 'input window, operand 2, single buffered']
    #allocation8 [shape = 'u8[69632]{0}', space=vmem, size = 0x11000, scoped, tag = 'input window, operand 3, single buffered']
    #allocation9 [shape = 's32[1]{0}', space=sflag, size = 0x4, scoped, tag = 'scoped memory for tpu_custom_call.1']
    #allocation10 [shape = 'u8[1024]{0}', space=vmem, size = 0x400, scoped, tag = 'output window, operand 0, single buffered']
    %9 = vsyncpa [#allocation3], 0
    %10 = vsyncpa [#allocation6], 0
    %11 = vsyncpa [#allocation9], 0
    %12 = vsyncpa [#allocation4], 0
    // Predicated region
    $region2: #{tpu_custom_call.1} parent=1 // pred_check
      _
    $region3: #{tpu_custom_call.1} parent=1 // pred_check_branch
      %14 = sbr.rel (0) target = $region5
    $region4: #{tpu_custom_call.1} parent=1 // pred_region
      %s16 = ssub.s32 128, 128
      %17 = vsyncadd [#allocation3], %s16
      %s19 = sshll.u32 [#allocation2], 4
      %s20 = int_to_ptr.vmem [resolvable:$true] %s19
      %22 = dma.hbm_to_vmem [thread:$0]  %s0, 128, %s20, [#allocation3]
    $region5: #{tpu_custom_call.1} parent=1 // pred_fallthru
      _
    // Predicated region
    $region6: #{tpu_custom_call.1} parent=1 // pred_check
      _
    $region7: #{tpu_custom_call.1} parent=1 // pred_check_branch
      %24 = sbr.rel (0) target = $region9
    $region8: #{tpu_custom_call.1} parent=1 // pred_region
      %s26 = ssub.s32 128, 128
      %27 = vsyncadd [#allocation6], %s26
      %s29 = sshll.u32 [#allocation5], 4
      %s30 = int_to_ptr.vmem [resolvable:$true] %s29
      %32 = dma.hbm_to_vmem [thread:$0]  %s1, 128, %s30, [#allocation6]
    $region9: #{tpu_custom_call.1} parent=1 // pred_fallthru
      _
    // Predicated region
    $region10: #{tpu_custom_call.1} parent=1 // pred_check
      _
    $region11: #{tpu_custom_call.1} parent=1 // pred_check_branch
      %34 = sbr.rel (0) target = $region13
    $region12: #{tpu_custom_call.1} parent=1 // pred_region
      %s36 = ssub.s32 128, 128
      %37 = vsyncadd [#allocation6], %s36
      %s39 = sshll.u32 [#allocation7], 4
      %s40 = int_to_ptr.vmem [resolvable:$true] %s39
      %42 = dma.hbm_to_vmem [thread:$0]  %s2, 128, %s40, [#allocation6]
    $region13: #{tpu_custom_call.1} parent=1 // pred_fallthru
      _
    // Predicated region
    $region14: #{tpu_custom_call.1} parent=1 // pred_check
      _
    $region15: #{tpu_custom_call.1} parent=1 // pred_check_branch
      %44 = sbr.rel (0) target = $region17
    $region16: #{tpu_custom_call.1} parent=1 // pred_region
      %s46 = ssub.s32 2176, 2176
      %47 = vsyncadd [#allocation9], %s46
      %s48 = sshll.u32 [#allocation8], 4
      %s49 = int_to_ptr.vmem [resolvable:$true] %s48
      %54 = dma.hbm_to_vmem [thread:$0]  %s3, 2176, %s49, [#allocation9], 128, 128, 8
    $region17: #{tpu_custom_call.1} parent=1 // pred_fallthru
      _
    // Predicated region
    $region18: #{tpu_custom_call.1} parent=1 // pred_check
      _
    $region19: #{tpu_custom_call.1} parent=1 // pred_check_branch
      %56 = sbr.rel (0) target = $region21
    $region20: #{tpu_custom_call.1} parent=1 // pred_region
      %57 = dma.done [#allocation3], 128
    $region21: #{tpu_custom_call.1} parent=1 // pred_fallthru
      _
    // Predicated region
    $region22: #{tpu_custom_call.1} parent=1 // pred_check
      _
    $region23: #{tpu_custom_call.1} parent=1 // pred_check_branch
      %59 = sbr.rel (0) target = $region25
    $region24: #{tpu_custom_call.1} parent=1 // pred_region
      %60 = dma.done [#allocation6], 128
    $region25: #{tpu_custom_call.1} parent=1 // pred_fallthru
      _
    // Predicated region
    $region26: #{tpu_custom_call.1} parent=1 // pred_check
      _
    $region27: #{tpu_custom_call.1} parent=1 // pred_check_branch
      %62 = sbr.rel (0) target = $region29
    $region28: #{tpu_custom_call.1} parent=1 // pred_region
      %63 = dma.done [#allocation6], 128
    $region29: #{tpu_custom_call.1} parent=1 // pred_fallthru
      _
    // Predicated region
    $region30: #{tpu_custom_call.1} parent=1 // pred_check
      _
    $region31: #{tpu_custom_call.1} parent=1 // pred_check_branch
      %65 = sbr.rel (0) target = $region33
    $region32: #{tpu_custom_call.1} parent=1 // pred_region
      %66 = dma.done [#allocation9], 2176
    $region33: #{tpu_custom_call.1} parent=1 // pred_fallthru
      _
    %v67 = vld [vmem:[#allocation8] sm:$0xff]
    %v68 = vld [vmem:[#allocation8 + $0x8] sm:$0xff]
    %v69 = vld [vmem:[#allocation8 + $0x10] sm:$0xff]
    %v70 = vld [vmem:[#allocation8 + $0x18] sm:$0xff]
    %v71 = vld [vmem:[#allocation8 + $0x20] sm:$0xff]
    %v72 = vld [vmem:[#allocation8 + $0x28] sm:$0xff]
    %v73 = vld [vmem:[#allocation8 + $0x30] sm:$0xff]
    %v74 = vld [vmem:[#allocation8 + $0x38] sm:$0x3f]
    %v75 = vld [vmem:[#allocation8 + $0x40] sm:$0xff]
    %v76 = vld [vmem:[#allocation8 + $0x48] sm:$0xff]
    %v77 = vld [vmem:[#allocation8 + $0x50] sm:$0xff]
    %v78 = vld [vmem:[#allocation8 + $0x58] sm:$0xff]
    %v79 = vld [vmem:[#allocation8 + $0x60] sm:$0xff]
    %v80 = vld [vmem:[#allocation8 + $0x68] sm:$0xff]
    %v81 = vld [vmem:[#allocation8 + $0x70] sm:$0xff]
    %v82 = vld [vmem:[#allocation8 + $0x78] sm:$0xff]
    %v83 = vld [vmem:[#allocation8 + $0x80] sm:$0x1]
    %v84 = vld [vmem:[#allocation8 + $0x81] sm:$0x1]
    %v85 = vld [vmem:[#allocation8 + $0x82] sm:$0x1]
    %v86 = vld [vmem:[#allocation8 + $0x83] sm:$0x1]
    %v87 = vld [vmem:[#allocation8 + $0x84] sm:$0x1]
    %v88 = vld [vmem:[#allocation2] sm:$0xff]
    %v89 = vld [vmem:[#allocation5] sm:$0xff]
    %v90 = vld [vmem:[#allocation7] sm:$0xff]
    %v91 = vlaneseq
    %v92 = vshrl.u32 %v91, 7
    %v93 = vsub.s32 0, %v92
    %v94 = vrot.slane %v83, %v93
    %vm95 = vcmask 195584
    %v97 = vsel %vm95, %v88, 0
    %v100 = vsel %vm95, %v90, 0
    %102 = vmatprep.subr.mxu0 0.0
    %103 = vmatpush1.msra.mxu0 %v67
    %104 = vmatprep.subr.mxu0 0.0
    %105 = vmatpush1.msra.mxu0 %v68
    %106 = vmatprep.subr.mxu0 0.0
    %107 = vmatpush1.msra.mxu0 %v69
    %108 = vmatprep.subr.mxu0 0.0
    %109 = vmatpush1.msra.mxu0 0.0
    %110 = vmatprep.subr.mxu0 0.0
    %111 = vmatpush1.msra.mxu0 0.0
    %112 = vmatprep.subr.mxu0 0.0
    %113 = vmatpush1.msra.mxu0 0.0
    %114 = vmatprep.subr.mxu0 0.0
    %115 = vmatpush1.msra.mxu0 0.0
    %116 = vmatprep.subr.mxu0 0.0
    %117 = vmatpush1.msra.mxu0 0.0
    %118 = vmatprep.subr.mxu0 0.0
    %119 = vmatpush1.msra.mxu0 0.0
    %120 = vmatprep.subr.mxu0 0.0
    %121 = vmatpush1.msra.mxu0 0.0
    %122 = vmatprep.subr.mxu0 0.0
    %123 = vmatpush1.msra.mxu0 0.0
    %124 = vmatprep.subr.mxu0 0.0
    %125 = vmatpush1.msra.mxu0 0.0
    %126 = vmatprep.subr.mxu0 0.0
    %127 = vmatpush1.msra.mxu0 0.0
    %128 = vmatprep.subr.mxu0 0.0
    %129 = vmatpush1.msra.mxu0 0.0
    %130 = vmatprep.subr.mxu0 0.0
    %131 = vmatpush1.msra.mxu0 0.0
    %132 = vmatprep.subr.mxu0 0.0
    %133 = vmatpush1.msra.mxu0 0.0
    %134 = vmatprep.subr.mxu0 0.0
    %135 = vmatpush1.msra.mxu0 0.0
    %136 = vmatprep.subr.mxu0 0.0
    %137 = vmatpush1.msra.mxu0 0.0
    %138 = vmatprep.subr.mxu0 0.0
    %139 = vmatpush1.msra.mxu0 0.0
    %140 = vmatprep.subr.mxu0 0.0
    %141 = vmatpush1.msra.mxu0 0.0
    %142 = vmatprep.subr.mxu0 0.0
    %143 = vmatpush1.msra.mxu0 0.0
    %144 = vmatprep.subr.mxu0 0.0
    %145 = vmatpush1.msra.mxu0 0.0
    %146 = vmatprep.subr.mxu0 0.0
    %147 = vmatpush1.msra.mxu0 0.0
    %148 = vmatprep.subr.mxu0 0.0
    %149 = vmatpush1.msra.mxu0 0.0
    %150 = vmatprep.subr.mxu0 0.0
    %151 = vmatpush1.msra.mxu0 0.0
    %152 = vmatprep.subr.mxu0 0.0
    %153 = vmatpush1.msra.mxu0 0.0
    %154 = vmatprep.subr.mxu0 0.0
    %155 = vmatpush1.msra.mxu0 0.0
    %156 = vmatprep.subr.mxu0 0.0
    %157 = vmatpush1.msra.mxu0 0.0
    %158 = vmatprep.subr.mxu0 0.0
    %159 = vmatpush1.msra.mxu0 0.0
    %160 = vmatprep.subr.mxu0 0.0
    %161 = vmatpush1.msra.mxu0 0.0
    %162 = vmatprep.subr.mxu0 0.0
    %163 = vmatpush1.msra.mxu0 0.0
    %164 = vmatprep.subr.mxu0 0.0
    %165 = vmatpush1.msra.mxu0 0.0
    %166 = vmatprep.mubr.f32.mxu0 0.0
    %167 = vmatmul.mubr.f32.gmra.mrb[0].mxu0 %v97
    %v168 = vpop.f32.mrb[0].mxu0
    %v169 = vadd.f32 %v94, %v168
    %v170 = vpop.f32.mrb[0].mxu0
    %171 = vmatprep.mubr.f32.mxu0 0.0
    %172 = vmatmul.mubr.f32.gmra.mrb[0].mxu0 %v100
    %v173 = vpop.f32.mrb[0].mxu0
    %v174 = vadd.f32 %v94, %v173
    %v175 = vpop.f32.mrb[0].mxu0
    %176 = vdwg.mxu0
    %vm177 = vcmask 130048
    %v178 = vsel %vm177, %v169, 0.0
    %179 = vadd.xlane.f32.xlu0 %v178
    %v180 = vpop.xlane.xlu0 %179
    %v181 = vsel %vm177, %v174, 0.0
    %182 = vadd.xlane.f32.xlu0 %v181
    %v183 = vpop.xlane.xlu0 %182
    %v184 = vrcp.pop 16.0
    %v185 = vmul.f32 %v180, %v184
    %v186 = vmul.f32 %v183, %v184
    %v187 = vsub.f32 %v169, %v185
    %v188 = vsub.f32 %v174, %v186
    %v189 = vmul.f32 %v187, %v187
    %v190 = vmul.f32 %v188, %v188
    %v191 = vsel %vm177, %v189, 0.0
    %192 = vadd.xlane.f32.xlu0 %v191
    %v193 = vpop.xlane.xlu0 %192
    %v194 = vsel %vm177, %v190, 0.0
    %195 = vadd.xlane.f32.xlu0 %v194
    %v196 = vpop.xlane.xlu0 %195
    %v197 = vmul.f32 %v193, %v184
    %v198 = vmul.f32 %v196, %v184
    %v199 = vadd.f32 %v197, 1e-05
    %v200 = vadd.f32 %v198, 1e-05
    %v201 = vrsqrt.pop %v199
    %v202 = vrsqrt.pop %v200
    %v203 = vmul.f32 %v187, %v201
    %v204 = vmul.f32 %v188, %v202
    %v205 = vlaneseq
    %v206 = vshrl.u32 %v205, 7
    %v207 = vsub.s32 0, %v206
    %v208 = vrot.slane %v84, %v207
    %v209 = vmul.f32 %v203, %v208
    %v210 = vmul.f32 %v204, %v208
    %v211 = vlaneseq
    %v212 = vshrl.u32 %v211, 7
    %v213 = vsub.s32 0, %v212
    %v214 = vrot.slane %v85, %v213
    %v215 = vadd.f32 %v209, %v214
    %v216 = vadd.f32 %v210, %v214
    %v217 = vtanh.pop %v215
    %v218 = vtanh.pop %v216
    %220 = vrot.lane.b32.xlu0 %v89, 16
    %v221 = vpop.permute.xlu0 %220
    %224 = vrot.lane.b32.xlu0 %v218, 22
    %v225 = vpop.permute.xlu0 %224
    %v227 = vsel %vm177, %v217, %v221
    %vm228 = vcmask 179200
    %v229 = vsel %vm228, %v227, %v225
    %v230 = vlaneseq
    %v231 = vshrl.u32 %v230, 7
    %v232 = vsub.s32 0, %v231
    %v233 = vrot.slane %v86, %v232
    %vm234 = vcmask 310272
    %v236 = vsel %vm234, %v229, 0
    %vm238 = vcmask 1045504
    %v240 = vsel %vm238, %v74, 0
    %242 = vmatprep.subr.mxu0 0.0
    %243 = vmatpush1.msra.mxu0 %v70
    %244 = vmatprep.subr.mxu0 0.0
    %245 = vmatpush1.msra.mxu0 %v71
    %246 = vmatprep.subr.mxu0 0.0
    %247 = vmatpush1.msra.mxu0 %v72
    %248 = vmatprep.subr.mxu0 0.0
    %249 = vmatpush1.msra.mxu0 %v73
    %250 = vmatprep.subr.mxu0 0.0
    %251 = vmatpush1.msra.mxu0 %v240
    %252 = vmatprep.subr.mxu0 0.0
    %253 = vmatpush1.msra.mxu0 0.0
    %254 = vmatprep.subr.mxu0 0.0
    %255 = vmatpush1.msra.mxu0 0.0
    %256 = vmatprep.subr.mxu0 0.0
    %257 = vmatpush1.msra.mxu0 0.0
    %258 = vmatprep.subr.mxu0 0.0
    %259 = vmatpush1.msra.mxu0 0.0
    %260 = vmatprep.subr.mxu0 0.0
    %261 = vmatpush1.msra.mxu0 0.0
    %262 = vmatprep.subr.mxu0 0.0
    %263 = vmatpush1.msra.mxu0 0.0
    %264 = vmatprep.subr.mxu0 0.0
    %265 = vmatpush1.msra.mxu0 0.0
    %266 = vmatprep.subr.mxu0 0.0
    %267 = vmatpush1.msra.mxu0 0.0
    %268 = vmatprep.subr.mxu0 0.0
    %269 = vmatpush1.msra.mxu0 0.0
    %270 = vmatprep.subr.mxu0 0.0
    %271 = vmatpush1.msra.mxu0 0.0
    %272 = vmatprep.subr.mxu0 0.0
    %273 = vmatpush1.msra.mxu0 0.0
    %274 = vmatprep.subr.mxu0 0.0
    %275 = vmatpush1.msra.mxu0 0.0
    %276 = vmatprep.subr.mxu0 0.0
    %277 = vmatpush1.msra.mxu0 0.0
    %278 = vmatprep.subr.mxu0 0.0
    %279 = vmatpush1.msra.mxu0 0.0
    %280 = vmatprep.subr.mxu0 0.0
    %281 = vmatpush1.msra.mxu0 0.0
    %282 = vmatprep.subr.mxu0 0.0
    %283 = vmatpush1.msra.mxu0 0.0
    %284 = vmatprep.subr.mxu0 0.0
    %285 = vmatpush1.msra.mxu0 0.0
    %286 = vmatprep.subr.mxu0 0.0
    %287 = vmatpush1.msra.mxu0 0.0
    %288 = vmatprep.subr.mxu0 0.0
    %289 = vmatpush1.msra.mxu0 0.0
    %290 = vmatprep.subr.mxu0 0.0
    %291 = vmatpush1.msra.mxu0 0.0
    %292 = vmatprep.subr.mxu0 0.0
    %293 = vmatpush1.msra.mxu0 0.0
    %294 = vmatprep.subr.mxu0 0.0
    %295 = vmatpush1.msra.mxu0 0.0
    %296 = vmatprep.subr.mxu0 0.0
    %297 = vmatpush1.msra.mxu0 0.0
    %298 = vmatprep.subr.mxu0 0.0
    %299 = vmatpush1.msra.mxu0 0.0
    %300 = vmatprep.subr.mxu0 0.0
    %301 = vmatpush1.msra.mxu0 0.0
    %302 = vmatprep.subr.mxu0 0.0
    %303 = vmatpush1.msra.mxu0 0.0
    %304 = vmatprep.subr.mxu0 0.0
    %305 = vmatpush1.msra.mxu0 0.0
    %306 = vmatprep.mubr.f32.mxu0 0.0
    %307 = vmatmul.mubr.f32.gmra.mrb[0].mxu0 %v236
    %v308 = vpop.f32.mrb[0].mxu0
    %v309 = vadd.f32 %v233, %v308
    %v310 = vpop.f32.mrb[0].mxu0
    %311 = vdwg.mxu0
    %v312 = vmax.f32 %v309, 0.0
    %v313 = vlaneseq
    %v314 = vshrl.u32 %v313, 7
    %v315 = vsub.s32 0, %v314
    %v316 = vrot.slane %v87, %v315
    %vm317 = vcmask 523264
    %v319 = vsel %vm317, %v312, 0
    %321 = vmatprep.subr.mxu0 0.0
    %322 = vmatpush1.msra.mxu0 %v75
    %323 = vmatprep.subr.mxu0 0.0
    %324 = vmatpush1.msra.mxu0 %v76
    %325 = vmatprep.subr.mxu0 0.0
    %326 = vmatpush1.msra.mxu0 %v77
    %327 = vmatprep.subr.mxu0 0.0
    %328 = vmatpush1.msra.mxu0 %v78
    %329 = vmatprep.subr.mxu0 0.0
    %330 = vmatpush1.msra.mxu0 %v79
    %331 = vmatprep.subr.mxu0 0.0
    %332 = vmatpush1.msra.mxu0 %v80
    %333 = vmatprep.subr.mxu0 0.0
    %334 = vmatpush1.msra.mxu0 %v81
    %335 = vmatprep.subr.mxu0 0.0
    %336 = vmatpush1.msra.mxu0 %v82
    %337 = vmatprep.subr.mxu0 0.0
    %338 = vmatpush1.msra.mxu0 0.0
    %339 = vmatprep.subr.mxu0 0.0
    %340 = vmatpush1.msra.mxu0 0.0
    %341 = vmatprep.subr.mxu0 0.0
    %342 = vmatpush1.msra.mxu0 0.0
    %343 = vmatprep.subr.mxu0 0.0
    %344 = vmatpush1.msra.mxu0 0.0
    %345 = vmatprep.subr.mxu0 0.0
    %346 = vmatpush1.msra.mxu0 0.0
    %347 = vmatprep.subr.mxu0 0.0
    %348 = vmatpush1.msra.mxu0 0.0
    %349 = vmatprep.subr.mxu0 0.0
    %350 = vmatpush1.msra.mxu0 0.0
    %351 = vmatprep.subr.mxu0 0.0
    %352 = vmatpush1.msra.mxu0 0.0
    %353 = vmatprep.subr.mxu0 0.0
    %354 = vmatpush1.msra.mxu0 0.0
    %355 = vmatprep.subr.mxu0 0.0
    %356 = vmatpush1.msra.mxu0 0.0
    %357 = vmatprep.subr.mxu0 0.0
    %358 = vmatpush1.msra.mxu0 0.0
    %359 = vmatprep.subr.mxu0 0.0
    %360 = vmatpush1.msra.mxu0 0.0
    %361 = vmatprep.subr.mxu0 0.0
    %362 = vmatpush1.msra.mxu0 0.0
    %363 = vmatprep.subr.mxu0 0.0
    %364 = vmatpush1.msra.mxu0 0.0
    %365 = vmatprep.subr.mxu0 0.0
    %366 = vmatpush1.msra.mxu0 0.0
    %367 = vmatprep.subr.mxu0 0.0
    %368 = vmatpush1.msra.mxu0 0.0
    %369 = vmatprep.subr.mxu0 0.0
    %370 = vmatpush1.msra.mxu0 0.0
    %371 = vmatprep.subr.mxu0 0.0
    %372 = vmatpush1.msra.mxu0 0.0
    %373 = vmatprep.subr.mxu0 0.0
    %374 = vmatpush1.msra.mxu0 0.0
    %375 = vmatprep.subr.mxu0 0.0
    %376 = vmatpush1.msra.mxu0 0.0
    %377 = vmatprep.subr.mxu0 0.0
    %378 = vmatpush1.msra.mxu0 0.0
    %379 = vmatprep.subr.mxu0 0.0
    %380 = vmatpush1.msra.mxu0 0.0
    %381 = vmatprep.subr.mxu0 0.0
    %382 = vmatpush1.msra.mxu0 0.0
    %383 = vmatprep.subr.mxu0 0.0
    %384 = vmatpush1.msra.mxu0 0.0
    %385 = vmatprep.mubr.f32.mxu0 0.0
    %386 = vmatmul.mubr.f32.gmra.mrb[0].mxu0 %v319
    %v387 = vpop.f32.mrb[0].mxu0
    %v388 = vadd.f32 %v316, %v387
    %v389 = vpop.f32.mrb[0].mxu0
    %390 = vdwg.mxu0
    %v391 = vlaneseq
    %v392 = vand.u32 %v391, 127
    %vm393 = vcmp.ge.s32.totalorder %v392, 16
    %v394 = vtanh.pop %v388
    %v395 = vsel %vm393, 1, 0
    %vm396 = vcmp.eq.s32.totalorder %v395, 1
    %v397 = vsel %vm396, %v394, %v388
    %v398 = vsel %vm177, %v218, %v221
    %v399 = vsub.f32 %v398, %v397
    %v400 = vmul.f32 %v399, %v399
    %vm401 = vcmp.lt.s32.totalorder %v392, 16
    %v402 = vsel %vm401, 1, 0
    %v403 = vcvt.s32.f32 %v402
    %v404 = vcvt.s32.f32 %v395
    %vm405 = vcmask 1040384
    %v406 = vsel %vm405, %v403, %v404
    %v408 = vsel %vm228, %v406, 0
    %v411 = vsel %vm228, %v400, 0
    %413 = vmatprep.subr.mxu0 0.0
    %414 = vmatpush1.xpose.msra.mxu0 %v411
    %415 = vmatprep.subr.mxu0 0.0
    %416 = vmatpush1.xpose.msra.mxu0 0.0
    %417 = vmatprep.subr.mxu0 0.0
    %418 = vmatpush1.xpose.msra.mxu0 0.0
    %419 = vmatprep.subr.mxu0 0.0
    %420 = vmatpush1.xpose.msra.mxu0 0.0
    %421 = vmatprep.subr.mxu0 0.0
    %422 = vmatpush1.xpose.msra.mxu0 0.0
    %423 = vmatprep.subr.mxu0 0.0
    %424 = vmatpush1.xpose.msra.mxu0 0.0
    %425 = vmatprep.subr.mxu0 0.0
    %426 = vmatpush1.xpose.msra.mxu0 0.0
    %427 = vmatprep.subr.mxu0 0.0
    %428 = vmatpush1.xpose.msra.mxu0 0.0
    %429 = vmatprep.subr.mxu0 0.0
    %430 = vmatpush1.xpose.msra.mxu0 0.0
    %431 = vmatprep.subr.mxu0 0.0
    %432 = vmatpush1.xpose.msra.mxu0 0.0
    %433 = vmatprep.subr.mxu0 0.0
    %434 = vmatpush1.xpose.msra.mxu0 0.0
    %435 = vmatprep.subr.mxu0 0.0
    %436 = vmatpush1.xpose.msra.mxu0 0.0
    %437 = vmatprep.subr.mxu0 0.0
    %438 = vmatpush1.xpose.msra.mxu0 0.0
    %439 = vmatprep.subr.mxu0 0.0
    %440 = vmatpush1.xpose.msra.mxu0 0.0
    %441 = vmatprep.subr.mxu0 0.0
    %442 = vmatpush1.xpose.msra.mxu0 0.0
    %443 = vmatprep.subr.mxu0 0.0
    %444 = vmatpush1.xpose.msra.mxu0 0.0
    %445 = vmatprep.subr.mxu0 0.0
    %446 = vmatpush1.xpose.msra.mxu0 0.0
    %447 = vmatprep.subr.mxu0 0.0
    %448 = vmatpush1.xpose.msra.mxu0 0.0
    %449 = vmatprep.subr.mxu0 0.0
    %450 = vmatpush1.xpose.msra.mxu0 0.0
    %451 = vmatprep.subr.mxu0 0.0
    %452 = vmatpush1.xpose.msra.mxu0 0.0
    %453 = vmatprep.subr.mxu0 0.0
    %454 = vmatpush1.xpose.msra.mxu0 0.0
    %455 = vmatprep.subr.mxu0 0.0
    %456 = vmatpush1.xpose.msra.mxu0 0.0
    %457 = vmatprep.subr.mxu0 0.0
    %458 = vmatpush1.xpose.msra.mxu0 0.0
    %459 = vmatprep.subr.mxu0 0.0
    %460 = vmatpush1.xpose.msra.mxu0 0.0
    %461 = vmatprep.subr.mxu0 0.0
    %462 = vmatpush1.xpose.msra.mxu0 0.0
    %463 = vmatprep.subr.mxu0 0.0
    %464 = vmatpush1.xpose.msra.mxu0 0.0
    %465 = vmatprep.subr.mxu0 0.0
    %466 = vmatpush1.xpose.msra.mxu0 0.0
    %467 = vmatprep.subr.mxu0 0.0
    %468 = vmatpush1.xpose.msra.mxu0 0.0
    %469 = vmatprep.subr.mxu0 0.0
    %470 = vmatpush1.xpose.msra.mxu0 0.0
    %471 = vmatprep.subr.mxu0 0.0
    %472 = vmatpush1.xpose.msra.mxu0 0.0
    %473 = vmatprep.subr.mxu0 0.0
    %474 = vmatpush1.xpose.msra.mxu0 0.0
    %475 = vmatprep.subr.mxu0 0.0
    %476 = vmatpush1.xpose.msra.mxu0 0.0
    %477 = vmatprep.mubr.f32.mxu0 0.0
    %478 = vmatmul.mubr.f32.gmra.mrb[0].mxu0 %v408
    %v479 = vpop.f32.mrb[0].mxu0
    %v480 = vadd.f32 0.0, %v479
    %v481 = vpop.f32.mrb[0].mxu0
    %482 = vdwg.mxu0
    %v483 = vrsqrt.pop %v480
    %v484 = vmul.f32 %v480, %v483
    %vm485 = vcmp.eq.f32.partialorder %v480, inf
    %v486 = vsel %vm485, %v480, %v484
    %vm487 = vcmp.eq.f32.partialorder %v480, 0.0
    %v488 = vand.u32 %v480, 2147483648
    %v489 = vsel %vm487, %v488, %v486
    %vm490 = vcmask 58368
    %491 = vst.msk [vmem:[#allocation10] sm:$0x3] %vm490, %v489
    // Predicated region
    $region34: #{tpu_custom_call.1} parent=1 // pred_check
      _
    $region35: #{tpu_custom_call.1} parent=1 // pred_check_branch
      %493 = sbr.rel (0) target = $region37
    $region36: #{tpu_custom_call.1} parent=1 // pred_region
      %s495 = ssub.s32 32, 32
      %496 = vsyncadd [#allocation4], %s495
      %s498 = sshll.u32 [#allocation10], 4
      %s499 = int_to_ptr.vmem [resolvable:$true] %s498
      %501 = dma.vmem_to_hbm [thread:$0]  %s499, 32, %s4, [#allocation4]
    $region37: #{tpu_custom_call.1} parent=1 // pred_fallthru
      _
    // Predicated region
    $region38: #{tpu_custom_call.1} parent=1 // pred_check
      _
    $region39: #{tpu_custom_call.1} parent=1 // pred_check_branch
      %503 = sbr.rel (0) target = $region41
    $region40: #{tpu_custom_call.1} parent=1 // pred_region
      %504 = dma.done [#allocation4], 32
    $region41: #{tpu_custom_call.1} parent=1 // pred_fallthru
      _
    %505 = vsyncpa [#allocation3], 1
    %506 = vsyncpa [#allocation6], 1
    %507 = vsyncpa [#allocation9], 1
    %508 = vsyncpa [#allocation4], 1

</llo_original>
